<compile_context>
chip_gen: v7x
topology: tpu7x:2x2x1
jax: 0.10.0
libtpu: 0.0.40
codegen_flags: <defaults>
</compile_context>

<pallas_src>
import math

import jax
import jax.numpy as jnp
from jax.experimental import pallas as pl
from jax.experimental.pallas import tpu as pltpu


def _drop_path_kernel(scale_ref, x_ref, o_ref):
    # scale_ref: (B, 1)  per-sample factor (0 for dropped samples, 1/keep_prob otherwise)
    # x_ref/o_ref: (B, TM) lane-dense column tile of the flattened input.
    o_ref[...] = x_ref[...] * scale_ref[...]


def _pick_col_tile(m_padded, batch, itemsize, target_bytes=4 * 1024 * 1024):
    """Largest multiple-of-128 divisor of m_padded whose block fits target_bytes."""
    max_cols = max(128, target_bytes // max(1, batch * itemsize))
    best = 128
    t = 128
    while t <= m_padded:
        if m_padded % t == 0 and t <= max_cols:
            best = t
        t += 128
    return best


def _drop_path_scale_call(x, scale):
    """out[b, ...] = x[b, ...] * scale[b], via a single lane-dense Pallas kernel."""
    orig_shape = x.shape
    orig_dtype = x.dtype
    B = orig_shape[0]
    M = int(math.prod(orig_shape[1:]))  # all non-batch dims folded into lanes

    x2 = x.reshape(B, M)
    # Pad the flattened feature axis up to a multiple of 128 lanes so the
    # store path is unmasked (lane-dense) on every generation (esp. v5e).
    Mp = ((M + 127) // 128) * 128
    if Mp != M:
        x2 = jnp.pad(x2, ((0, 0), (0, Mp - M)))

    tm = _pick_col_tile(Mp, B, x2.dtype.itemsize)
    grid = (Mp // tm,)

    # Keep the multiply in x.dtype (no upcast inside the kernel).
    scale2 = scale.reshape(B, 1).astype(orig_dtype)

    out2 = pl.pallas_call(
        _drop_path_kernel,
        out_shape=jax.ShapeDtypeStruct((B, Mp), orig_dtype),
        grid=grid,
        in_specs=[
            pl.BlockSpec((B, 1), lambda j: (0, 0)),    # per-sample scale (resident)
            pl.BlockSpec((B, tm), lambda j: (0, j)),   # lane-dense column tile of x
        ],
        out_specs=pl.BlockSpec((B, tm), lambda j: (0, j)),
        compiler_params=pltpu.CompilerParams(
            dimension_semantics=("parallel",)),
    )(scale2, x2)

    if Mp != M:
        out2 = out2[:, :M]
    return out2.reshape(orig_shape)


def drop_path_forward(x, drop_prob: float = 0.0, training: bool = False, *, key=None):
    """JAX/Pallas equivalent of the PyTorch drop_path / DropPath.forward."""
    if drop_prob == 0.0 or not training:
        return x  # identity, exactly as in the reference module
    keep_prob = 1.0 - drop_prob
    B = x.shape[0]
    # Same construction as the PyTorch code: floor(keep_prob + U[0,1)) is 1
    # with probability keep_prob (keep) and 0 otherwise (drop).
    u = jax.random.uniform(key, (B,), dtype=jnp.float32)
    random_tensor = jnp.floor(keep_prob + u)
    scale = random_tensor / keep_prob          # 0 or 1/keep_prob per sample
    return _drop_path_scale_call(x, scale)


def drop_path_reference(x, drop_prob: float, training: bool, *, key=None):
    """Pure-JAX reference mirroring the PyTorch forward (same RNG key -> same mask)."""
    if drop_prob == 0.0 or not training:
        return x
    keep_prob = 1.0 - drop_prob
    shape = (x.shape[0],) + (1,) * (x.ndim - 1)
    u = jax.random.uniform(key, (x.shape[0],), dtype=jnp.float32)
    random_tensor = jnp.floor(keep_prob + u).reshape(shape).astype(x.dtype)
    return x / keep_prob * random_tensor


if __name__ == "__main__":
    # Small ViT-style token tensor: batch=2, tokens=16, channels=64.
    B, N, C = 2, 16, 64
    drop_prob = 0.25

    key = jax.random.PRNGKey(0)
    k_x, k_mask = jax.random.split(key)
    x = jax.random.normal(k_x, (B, N, C), dtype=jnp.float32)

    # Training path (stochastic depth active): runs the Pallas kernel.
    out_train = drop_path_forward(x, drop_prob, training=True, key=k_mask)
    out_train = jax.block_until_ready(out_train)
    ref_train = drop_path_reference(x, drop_prob, True, key=k_mask)
    assert out_train.shape == x.shape
    assert jnp.allclose(out_train, ref_train, atol=1e-5, rtol=1e-5), \
        "mismatch vs reference (training path)"

    # Eval path: DropPath is the identity (module semantics).
    out_eval = drop_path_forward(x, drop_prob, training=False, key=k_mask)
    assert jnp.array_equal(out_eval, x), "eval path must be identity"

    print("KERNEL_OK")
</pallas_src>

<mosaic_0001>
module attributes {stable_mosaic.version = 11 : i64} {
  func.func @_drop_path_kernel(%arg0: i32, %arg1: memref<2x1xf32, #tpu.memory_space<vmem>>, %arg2: memref<2x1024xf32, #tpu.memory_space<vmem>>, %arg3: memref<2x1024xf32, #tpu.memory_space<vmem>>) attributes {dimension_semantics = [#tpu.dimension_semantics<parallel>], iteration_bounds = array<i64: 1>, scalar_prefetch = 0 : i64, scratch_operands = 0 : i64, tpu.core_type = #tpu.core_type<tc>, window_params = [{pipeline_mode = #tpu.pipeline_mode<synchronous>, transform_indices = @transform_0, window_bounds = array<i64: 2, 1>}, {transform_indices = @transform_1, window_bounds = array<i64: 2, 1024>}, {transform_indices = @transform_2, window_bounds = array<i64: 2, 1024>}]} {
    %c0 = arith.constant 0 : index
    %c0_0 = arith.constant 0 : index
    %0 = vector.load %arg2[%c0, %c0_0] : memref<2x1024xf32, #tpu.memory_space<vmem>>, vector<2x1024xf32>
    %c0_1 = arith.constant 0 : index
    %c0_2 = arith.constant 0 : index
    %1 = vector.load %arg1[%c0_1, %c0_2] : memref<2x1xf32, #tpu.memory_space<vmem>>, vector<2x1xf32>
    %2 = vector.broadcast %1 : vector<2x1xf32> to vector<2x1024xf32>
    %3 = arith.mulf %0, %2 : vector<2x1024xf32>
    %c0_3 = arith.constant 0 : index
    %c0_4 = arith.constant 0 : index
    %4 = vector.load %arg3[%c0_3, %c0_4] : memref<2x1024xf32, #tpu.memory_space<vmem>>, vector<2x1024xf32>
    tpu.vector_store %arg3[%c0_3, %c0_4], %3 {strides = array<i32>} : memref<2x1024xf32, #tpu.memory_space<vmem>>, vector<2x1024xf32>,
    return
  }
  func.func @transform_0(%arg0: i32) -> (i32, i32) {
    %c0_i32 = arith.constant 0 : i32
    %c0_i32_0 = arith.constant 0 : i32
    %c0_i32_1 = arith.constant 0 : i32
    return %c0_i32, %c0_i32_0 : i32, i32
  }
  func.func @transform_1(%arg0: i32) -> (i32, i32) {
    %c0_i32 = arith.constant 0 : i32
    %c0_i32_0 = arith.constant 0 : i32
    return %c0_i32, %arg0 : i32, i32
  }
  func.func @transform_2(%arg0: i32) -> (i32, i32) {
    %c0_i32 = arith.constant 0 : i32
    %c0_i32_0 = arith.constant 0 : i32
    return %c0_i32, %arg0 : i32, i32
  }
}

</mosaic_0001>

<llo_original>
// kernel: tpu_custom_call.1
$region0: #{tpu_custom_call.1}
  #allocation0 [shape = 'u32[]', space=smem, size = 0x4, offset = 0x4, fixed_abs, tag = 'smem constant byte address 0x4 - core index']
  #allocation1 [shape = 'u32[144,128]{1,0:T(1,128)}', space=vmem, size = 0x12000, scoped, tag = 'internal scratch']
  %s0 = inlined_call_operand.vmem [shape: f32[2,1], index: 0, kind: input, shape index: {}]
  %s1 = inlined_call_operand.hbm [shape: f32[2,1024], index: 1, kind: input, shape index: {}]
  %s2 = inlined_call_operand.hbm [shape: f32[2,1024], index: 2, kind: output, shape index: {}]
  %s3 = sld [smem:[#allocation0]]
  $region22: #{tpu_custom_call.1} parent=0
    _
  %s5 = ssub.s32 1, %s3
  %s6 = scalar_select 0, %s5, %s3
  $region1: #{tpu_custom_call.1} parent=0
    #allocation2 [shape = 'u8[8192]{0}', space=vmem, size = 0x2000, scoped, tag = 'input window, operand 1, single buffered']
    #allocation3 [shape = 's32[1]{0}', space=sflag, size = 0x4, scoped, tag = 'scoped memory for tpu_custom_call.1']
    #allocation4 [shape = 's32[1]{0}', space=sflag, size = 0x4, scoped, tag = 'scoped memory for tpu_custom_call.1']
    #allocation5 [shape = 'u8[8192]{0}', space=vmem, size = 0x2000, scoped, tag = 'output window, operand 0, single buffered']
    %7 = vsyncpa [#allocation3], 0
    %8 = vsyncpa [#allocation4], 0
    // Predicated region
    $region2: #{tpu_custom_call.1} parent=1 // pred_check
      _
    $region3: #{tpu_custom_call.1} parent=1 // pred_check_branch
      %10 = sbr.rel (0) target = $region5
    $region4: #{tpu_custom_call.1} parent=1 // pred_region
      _
    $region5: #{tpu_custom_call.1} parent=1 // pred_fallthru
      _
    // Predicated region
    $region6: #{tpu_custom_call.1} parent=1 // pred_check
      _
    $region7: #{tpu_custom_call.1} parent=1 // pred_check_branch
      %12 = sbr.rel (0) target = $region9
    $region8: #{tpu_custom_call.1} parent=1 // pred_region
      %s14 = ssub.s32 256, 256
      %15 = vsyncadd [#allocation3], %s14
      %s17 = sshll.u32 [#allocation2], 4
      %s18 = int_to_ptr.vmem [resolvable:$true] %s17
      %20 = dma.hbm_to_vmem [thread:$0]  %s1, 256, %s18, [#allocation3]
    $region9: #{tpu_custom_call.1} parent=1 // pred_fallthru
      _
    // Predicated region
    $region10: #{tpu_custom_call.1} parent=1 // pred_check
      _
    $region11: #{tpu_custom_call.1} parent=1 // pred_check_branch
      %22 = sbr.rel (0) target = $region13
    $region12: #{tpu_custom_call.1} parent=1 // pred_region
      %23 = dma.done [#allocation3], 256
    $region13: #{tpu_custom_call.1} parent=1 // pred_fallthru
      _
    %v24 = vld [vmem:[#allocation2] sm:$0xff]
    %v25 = vld [vmem:[#allocation2 + $0x8] sm:$0xff]
    %v26 = vld [vmem:[%s0] sm:$0x3]
    %28 = vset.pattern.permute.xlu0 0
    %29 = vperm.xlu0 %28, %v26
    %v30 = vpop.permute.xlu0 %29
    %v32 = vunpack.c.l.s4 269488144
    %v33 = vunpack.c.0.s8 %v32
    %v34 = vlaneseq
    %v35 = vshrl.u32 %v34, 7
    %v36 = vsub.s32 %v33, %v35
    %v37 = vrot.slane %v30, %v36
    %v39 = vmul.f32 %v24, %v37
    %v40 = vmul.f32 %v25, %v37
    %41 = vst [vmem:[#allocation5] sm:$0xff] %v39
    %42 = vst [vmem:[#allocation5 + $0x8] sm:$0xff] %v40
    // Predicated region
    $region14: #{tpu_custom_call.1} parent=1 // pred_check
      _
    $region15: #{tpu_custom_call.1} parent=1 // pred_check_branch
      %44 = sbr.rel (0) target = $region17
    $region16: #{tpu_custom_call.1} parent=1 // pred_region
      %s46 = ssub.s32 256, 256
      %47 = vsyncadd [#allocation4], %s46
      %s49 = sshll.u32 [#allocation5], 4
      %s50 = int_to_ptr.vmem [resolvable:$true] %s49
      %52 = dma.vmem_to_hbm [thread:$0]  %s50, 256, %s2, [#allocation4]
    $region17: #{tpu_custom_call.1} parent=1 // pred_fallthru
      _
    // Predicated region
    $region18: #{tpu_custom_call.1} parent=1 // pred_check
      _
    $region19: #{tpu_custom_call.1} parent=1 // pred_check_branch
      %54 = sbr.rel (0) target = $region21
    $region20: #{tpu_custom_call.1} parent=1 // pred_region
      %55 = dma.done [#allocation4], 256
    $region21: #{tpu_custom_call.1} parent=1 // pred_fallthru
      _
    %56 = vsyncpa [#allocation3], 1
    %57 = vsyncpa [#allocation4], 1

</llo_original>
